<compile_context>
chip_gen: v6e
topology: v6e:2x2x1
jax: 0.10.0
libtpu: 0.0.40
codegen_flags: <defaults>
</compile_context>

<pallas_src>
import functools

import jax
import jax.numpy as jnp
from jax.experimental import pallas as pl
from jax.experimental.pallas import tpu as pltpu


# ---------------------------------------------------------------------------
# Adaptive-max-pool bin helpers (all static Python ints -> fully unrolled).
# ---------------------------------------------------------------------------

def _bin_bounds(idx, in_size, out_size):
    """Adaptive-pool bin boundaries, identical to torch.adaptive_max_pool2d."""
    start = (idx * in_size) // out_size
    end = -(-((idx + 1) * in_size) // out_size)  # ceil div
    return start, end


def _covering_range(lo, hi, fine_bounds):
    """If [lo, hi) is exactly the union of fine bins a..b-1, return (a, b)."""
    starts = [s for s, _ in fine_bounds]
    ends = [e for _, e in fine_bounds]
    if lo not in starts or hi not in ends:
        return None
    a = starts.index(lo)
    b = ends.index(hi) + 1
    if b <= a:
        return None
    return (a, b)


def _spp_bins(x, pool_list, H, W):
    """x: (TB, H, W, BC) channels-last tile -> flat list of (TB, BC) bin maxima
    in torch order (pool levels as listed, row-major bins within a level).

    The finest level is reduced straight from pixels; coarser levels reuse the
    nearest finer level whose bins tile them exactly (static Python analysis),
    so each pixel is read once.  Reductions stay on H/W; channels stay on the
    128-lane axis (VPU only).
    """
    levels = {}  # p -> (bounds_h, bounds_w, [[ (TB, BC) bin max ]])
    for p in sorted(set(pool_list), reverse=True):
        bh = [_bin_bounds(i, H, p) for i in range(p)]
        bw = [_bin_bounds(j, W, p) for j in range(p)]

        src = None
        for q in sorted(k for k in levels if k > p):
            q_bh, q_bw, q_vals = levels[q]
            rr = [_covering_range(s, e, q_bh) for (s, e) in bh]
            cr = [_covering_range(s, e, q_bw) for (s, e) in bw]
            if all(r is not None for r in rr) and all(c is not None for c in cr):
                src = (q_vals, rr, cr)
                break  # smallest finer q => fewest partial maxima

        vals = []
        for i in range(p):
            row = []
            for j in range(p):
                if src is not None:
                    q_vals, rr, cr = src
                    (a0, a1), (b0, b1) = rr[i], cr[j]
                    parts = [q_vals[a][b]
                             for a in range(a0, a1) for b in range(b0, b1)]
                    v = parts[0]
                    for part in parts[1:]:
                        v = jnp.maximum(v, part)
                else:
                    hs, he = bh[i]
                    ws, we = bw[j]
                    # reduce over H/W only; C stays on lanes (VPU work)
                    v = jnp.max(x[:, hs:he, ws:we, :], axis=(1, 2))
                row.append(v)
            vals.append(row)
        levels[p] = (bh, bw, vals)

    out = []
    for p in pool_list:
        _, _, vals = levels[p]
        for i in range(p):
            for j in range(p):
                out.append(vals[i][j])
    return out


# ---------------------------------------------------------------------------
# Fully fused forward kernel: SPP + fc1 + ReLU + fc2 per batch tile.
# ---------------------------------------------------------------------------

def _fused_kernel(x_ref, w1_ref, b1_ref, w2_ref, b2_ref, o_ref, *,
                  pool_list, H, W):
    # x_ref block: (TB, H, W, C) -- channels on the lane axis.
    bins = _spp_bins(x_ref[...], pool_list, H, W)          # total x (TB, C)
    feats = jnp.concatenate(bins, axis=-1)                  # (TB, total*C), (t, c) order
    h = jnp.dot(feats, w1_ref[...], preferred_element_type=jnp.float32)
    h = jnp.maximum(h + b1_ref[...], 0.0)                   # fc1 + ReLU
    y = jnp.dot(h, w2_ref[...], preferred_element_type=jnp.float32) + b2_ref[...]
    o_ref[:, 0, :] = y.astype(o_ref.dtype)                  # fc2


def _permute_fc1_weight(w1, C, total, hidden):
    """torch fc1 rows are ordered c*total + t; the kernel builds features in
    (t, c) order, so reorder rows once: w1_perm[t*C + c] = w1[c*total + t]."""
    return (w1.reshape(C, total, hidden)
              .transpose(1, 0, 2)
              .reshape(total * C, hidden))


# ---------------------------------------------------------------------------
# Standalone SPP kernel (channel-tiled fallback + verification path).
# ---------------------------------------------------------------------------

def _spp_kernel(x_ref, o_ref, *, pool_list, H, W):
    # x_ref block: (TB, H, W, BC);  o_ref block: (TB, total, BC) lane-dense rows.
    bins = _spp_bins(x_ref[...], pool_list, H, W)
    for k, v in enumerate(bins):
        o_ref[:, k, :] = v


def spatial_pyramid_pooling(x_nchw, pool_list, *, block_b=None, block_c=None,
                            channel_major=True):
    """x: (B, C, H, W) -> (B, C * sum(p*p)).

    channel_major=True  -> torch flattening order (matches the PyTorch module).
    channel_major=False -> lane-major (t, c) order; pair with a row-permuted
                           fc1 weight (no activation transpose needed).
    """
    B, C, H, W = x_nchw.shape
    total = sum(p * p for p in pool_list)

    # channels-last: one XLA transpose puts C on the lane axis for the kernel
    x = jnp.transpose(x_nchw, (0, 2, 3, 1))  # (B, H, W, C)

    if block_c is None:
        # Channel tiling only for large C; last block dim must be a multiple
        # of 128 or equal to C.
        block_c = 512 if (C > 512 and C % 512 == 0) else C
    if block_b is None:
        # >= 2 grid steps along batch when B >= 2 (feeds both v7x TensorCores);
        # otherwise pack as many batches per step as ~8 MiB of VMEM allows.
        block_b = max(1, B // 2)
        bytes_per_b = H * W * block_c * jnp.dtype(x.dtype).itemsize
        block_b = max(1, min(block_b, (8 << 20) // max(1, bytes_per_b)))

    grid = (pl.cdiv(B, block_b), pl.cdiv(C, block_c))

    kernel = functools.partial(_spp_kernel, pool_list=tuple(pool_list), H=H, W=W)

    pooled = pl.pallas_call(
        kernel,
        out_shape=jax.ShapeDtypeStruct((B, total, C), x.dtype),
        grid_spec=pltpu.PrefetchScalarGridSpec(
            num_scalar_prefetch=0,
            grid=grid,
            in_specs=[pl.BlockSpec((block_b, H, W, block_c),
                                   lambda b, c: (b, 0, 0, c))],
            out_specs=pl.BlockSpec((block_b, total, block_c),
                                   lambda b, c: (b, 0, c)),
        ),
        compiler_params=pltpu.CompilerParams(
            dimension_semantics=("parallel", "parallel")),
    )(x)

    if channel_major:
        # torch: cat along last dim of (B, C, p*p) views, then .view(B, -1)
        return jnp.transpose(pooled, (0, 2, 1)).reshape(B, C * total)
    return pooled.reshape(B, total * C)


# ---------------------------------------------------------------------------
# Fused fc1 -> ReLU -> fc2 head (fallback path; shapes are tiny).
# ---------------------------------------------------------------------------

def _mlp_kernel(x_ref, w1_ref, b1_ref, w2_ref, b2_ref, o_ref):
    h = jnp.dot(x_ref[...], w1_ref[...], preferred_element_type=jnp.float32)
    h = jnp.maximum(h + b1_ref[...], 0.0)
    y = jnp.dot(h, w2_ref[...], preferred_element_type=jnp.float32) + b2_ref[...]
    o_ref[...] = y.astype(o_ref.dtype)


def mlp_head(feats, w1, b1, w2, b2):
    """relu(feats @ w1 + b1) @ w2 + b2 as one fused Pallas call."""
    B = feats.shape[0]
    out_dim = w2.shape[1]
    return pl.pallas_call(
        _mlp_kernel,
        out_shape=jax.ShapeDtypeStruct((B, out_dim), feats.dtype),
    )(feats, w1, b1, w2, b2)


# ---------------------------------------------------------------------------
# Full forward.
# ---------------------------------------------------------------------------

def steering_cnn_forward(x, params, pool_list=(1, 2, 4)):
    # TODO(synk): `backbone` is referenced but never defined in the reference module; identity here.
    feature_map = x
    B, C, H, W = feature_map.shape
    total = sum(p * p for p in pool_list)
    w1, b1, w2, b2 = params["w1"], params["b1"], params["w2"], params["b2"]
    hidden = w1.shape[1]
    out_dim = w2.shape[1]

    itemsize = jnp.dtype(feature_map.dtype).itemsize
    bytes_per_b = H * W * C * itemsize
    weight_bytes = (w1.size + b1.size + w2.size + b2.size) * itemsize
    w1p = _permute_fc1_weight(w1, C, total, hidden)

    # Fused path whenever a full-C batch tile + weights fit comfortably in
    # VMEM (v7x: 64 MiB physical, generous headroom kept).
    if bytes_per_b + weight_bytes <= (24 << 20):
        block_b = max(1, B // 2) if B >= 2 else 1
        block_b = max(1, min(block_b, (8 << 20) // max(1, bytes_per_b)))

        x_cl = jnp.transpose(feature_map, (0, 2, 3, 1))  # (B, H, W, C)
        kernel = functools.partial(_fused_kernel, pool_list=tuple(pool_list),
                                   H=H, W=W)
        out = pl.pallas_call(
            kernel,
            out_shape=jax.ShapeDtypeStruct((B, 1, out_dim), feature_map.dtype),
            grid_spec=pltpu.PrefetchScalarGridSpec(
                num_scalar_prefetch=0,
                grid=(pl.cdiv(B, block_b),),
                in_specs=[
                    pl.BlockSpec((block_b, H, W, C), lambda b: (b, 0, 0, 0)),
                    pl.BlockSpec((total * C, hidden), lambda b: (0, 0)),
                    pl.BlockSpec((1, hidden), lambda b: (0, 0)),
                    pl.BlockSpec((hidden, out_dim), lambda b: (0, 0)),
                    pl.BlockSpec((1, out_dim), lambda b: (0, 0)),
                ],
                out_specs=pl.BlockSpec((block_b, 1, out_dim),
                                       lambda b: (b, 0, 0)),
            ),
            compiler_params=pltpu.CompilerParams(
                dimension_semantics=("parallel",)),
        )(x_cl, w1p, b1, w2, b2)
        return out.reshape(B, out_dim)

    # Fallback for very large C: channel-tiled SPP kernel + fused MLP head
    # (lane-major features paired with the row-permuted fc1 weight, so no
    # activation transpose is ever needed).
    feats = spatial_pyramid_pooling(feature_map, pool_list, channel_major=False)
    return mlp_head(feats, w1p, b1, w2, b2)


if __name__ == "__main__":
    pool_list = (1, 2, 4)
    B, C, H, W = 2, 4, 16, 16
    hidden_size, output_size = 32, 1
    total = sum(p * p for p in pool_list)            # 21
    feat_dim = C * total                             # C * (1 + 4 + 16) = 84

    key = jax.random.PRNGKey(0)
    kx, k1, k2, k3, k4 = jax.random.split(key, 5)
    x = jax.random.normal(kx, (B, C, H, W), dtype=jnp.float32)            # NCHW
    w1 = 0.05 * jax.random.normal(k1, (feat_dim, hidden_size), jnp.float32)
    b1 = 0.05 * jax.random.normal(k2, (1, hidden_size), jnp.float32)
    w2 = 0.05 * jax.random.normal(k3, (hidden_size, output_size), jnp.float32)
    b2 = 0.05 * jax.random.normal(k4, (1, output_size), jnp.float32)
    params = dict(w1=w1, b1=b1, w2=w2, b2=b2)

    out = steering_cnn_forward(x, params, pool_list)
    out = jax.block_until_ready(out)
    assert out.shape == (B, output_size), out.shape

    # --- pure-JAX reference (same math as the PyTorch module) ---
    def ref_spp(xr, plist):
        Bb, Cc, Hh, Ww = xr.shape
        chunks = []
        for p in plist:
            bins = []
            for i in range(p):
                hs, he = _bin_bounds(i, Hh, p)
                for j in range(p):
                    ws, we = _bin_bounds(j, Ww, p)
                    bins.append(jnp.max(xr[:, :, hs:he, ws:we], axis=(2, 3)))
            chunks.append(jnp.stack(bins, axis=-1))        # (B, C, p*p)
        return jnp.concatenate(chunks, axis=-1).reshape(Bb, -1)

    feats_ref = ref_spp(x, pool_list)
    feats_kernel = jax.block_until_ready(spatial_pyramid_pooling(x, pool_list))
    assert jnp.allclose(feats_kernel, feats_ref), "SPP mismatch vs reference"

    ref_out = jnp.maximum(feats_ref @ w1 + b1, 0.0) @ w2 + b2
    assert jnp.allclose(out, ref_out, atol=1e-2, rtol=1e-2), "forward mismatch"

    print("KERNEL_OK")
</pallas_src>

<mosaic_0001>
module attributes {stable_mosaic.version = 11 : i64} {
  func.func @_fused_kernel(%arg0: i32, %arg1: memref<1x16x16x4xf32, #tpu.memory_space<vmem>>, %arg2: memref<84x32xf32, #tpu.memory_space<vmem>>, %arg3: memref<1x32xf32, #tpu.memory_space<vmem>>, %arg4: memref<32x1xf32, #tpu.memory_space<vmem>>, %arg5: memref<1x1xf32, #tpu.memory_space<vmem>>, %arg6: memref<1x1x1xf32, #tpu.memory_space<vmem>>) attributes {dimension_semantics = [#tpu.dimension_semantics<parallel>], iteration_bounds = array<i64: 2>, scalar_prefetch = 0 : i64, scratch_operands = 0 : i64, tpu.core_type = #tpu.core_type<tc>, window_params = [{transform_indices = @transform_0, window_bounds = array<i64: 1, 16, 16, 4>}, {pipeline_mode = #tpu.pipeline_mode<synchronous>, transform_indices = @transform_1, window_bounds = array<i64: 84, 32>}, {pipeline_mode = #tpu.pipeline_mode<synchronous>, transform_indices = @transform_2, window_bounds = array<i64: 1, 32>}, {pipeline_mode = #tpu.pipeline_mode<synchronous>, transform_indices = @transform_3, window_bounds = array<i64: 32, 1>}, {pipeline_mode = #tpu.pipeline_mode<synchronous>, transform_indices = @transform_4, window_bounds = array<i64: 1, 1>}, {transform_indices = @transform_5, window_bounds = array<i64: 1, 1, 1>}]} {
    %c0 = arith.constant 0 : index
    %c0_0 = arith.constant 0 : index
    %c0_1 = arith.constant 0 : index
    %c0_2 = arith.constant 0 : index
    %0 = vector.load %arg1[%c0, %c0_0, %c0_1, %c0_2] : memref<1x16x16x4xf32, #tpu.memory_space<vmem>>, vector<1x16x16x4xf32>
    %1 = vector.extract_strided_slice %0 {offsets = [0, 0, 0, 0], sizes = [1, 4, 4, 4], strides = [1, 1, 1, 1]} : vector<1x16x16x4xf32> to vector<1x4x4x4xf32>
    %cst = arith.constant dense<0xFF800000> : vector<1x4xf32>
    %2 = vector.multi_reduction <maximumf>, %1, %cst [1, 2] : vector<1x4x4x4xf32> to vector<1x4xf32>
    %3 = vector.extract_strided_slice %0 {offsets = [0, 0, 4, 0], sizes = [1, 4, 4, 4], strides = [1, 1, 1, 1]} : vector<1x16x16x4xf32> to vector<1x4x4x4xf32>
    %cst_3 = arith.constant dense<0xFF800000> : vector<1x4xf32>
    %4 = vector.multi_reduction <maximumf>, %3, %cst_3 [1, 2] : vector<1x4x4x4xf32> to vector<1x4xf32>
    %5 = vector.extract_strided_slice %0 {offsets = [0, 0, 8, 0], sizes = [1, 4, 4, 4], strides = [1, 1, 1, 1]} : vector<1x16x16x4xf32> to vector<1x4x4x4xf32>
    %cst_4 = arith.constant dense<0xFF800000> : vector<1x4xf32>
    %6 = vector.multi_reduction <maximumf>, %5, %cst_4 [1, 2] : vector<1x4x4x4xf32> to vector<1x4xf32>
    %7 = vector.extract_strided_slice %0 {offsets = [0, 0, 12, 0], sizes = [1, 4, 4, 4], strides = [1, 1, 1, 1]} : vector<1x16x16x4xf32> to vector<1x4x4x4xf32>
    %cst_5 = arith.constant dense<0xFF800000> : vector<1x4xf32>
    %8 = vector.multi_reduction <maximumf>, %7, %cst_5 [1, 2] : vector<1x4x4x4xf32> to vector<1x4xf32>
    %9 = vector.extract_strided_slice %0 {offsets = [0, 4, 0, 0], sizes = [1, 4, 4, 4], strides = [1, 1, 1, 1]} : vector<1x16x16x4xf32> to vector<1x4x4x4xf32>
    %cst_6 = arith.constant dense<0xFF800000> : vector<1x4xf32>
    %10 = vector.multi_reduction <maximumf>, %9, %cst_6 [1, 2] : vector<1x4x4x4xf32> to vector<1x4xf32>
    %11 = vector.extract_strided_slice %0 {offsets = [0, 4, 4, 0], sizes = [1, 4, 4, 4], strides = [1, 1, 1, 1]} : vector<1x16x16x4xf32> to vector<1x4x4x4xf32>
    %cst_7 = arith.constant dense<0xFF800000> : vector<1x4xf32>
    %12 = vector.multi_reduction <maximumf>, %11, %cst_7 [1, 2] : vector<1x4x4x4xf32> to vector<1x4xf32>
    %13 = vector.extract_strided_slice %0 {offsets = [0, 4, 8, 0], sizes = [1, 4, 4, 4], strides = [1, 1, 1, 1]} : vector<1x16x16x4xf32> to vector<1x4x4x4xf32>
    %cst_8 = arith.constant dense<0xFF800000> : vector<1x4xf32>
    %14 = vector.multi_reduction <maximumf>, %13, %cst_8 [1, 2] : vector<1x4x4x4xf32> to vector<1x4xf32>
    %15 = vector.extract_strided_slice %0 {offsets = [0, 4, 12, 0], sizes = [1, 4, 4, 4], strides = [1, 1, 1, 1]} : vector<1x16x16x4xf32> to vector<1x4x4x4xf32>
    %cst_9 = arith.constant dense<0xFF800000> : vector<1x4xf32>
    %16 = vector.multi_reduction <maximumf>, %15, %cst_9 [1, 2] : vector<1x4x4x4xf32> to vector<1x4xf32>
    %17 = vector.extract_strided_slice %0 {offsets = [0, 8, 0, 0], sizes = [1, 4, 4, 4], strides = [1, 1, 1, 1]} : vector<1x16x16x4xf32> to vector<1x4x4x4xf32>
    %cst_10 = arith.constant dense<0xFF800000> : vector<1x4xf32>
    %18 = vector.multi_reduction <maximumf>, %17, %cst_10 [1, 2] : vector<1x4x4x4xf32> to vector<1x4xf32>
    %19 = vector.extract_strided_slice %0 {offsets = [0, 8, 4, 0], sizes = [1, 4, 4, 4], strides = [1, 1, 1, 1]} : vector<1x16x16x4xf32> to vector<1x4x4x4xf32>
    %cst_11 = arith.constant dense<0xFF800000> : vector<1x4xf32>
    %20 = vector.multi_reduction <maximumf>, %19, %cst_11 [1, 2] : vector<1x4x4x4xf32> to vector<1x4xf32>
    %21 = vector.extract_strided_slice %0 {offsets = [0, 8, 8, 0], sizes = [1, 4, 4, 4], strides = [1, 1, 1, 1]} : vector<1x16x16x4xf32> to vector<1x4x4x4xf32>
    %cst_12 = arith.constant dense<0xFF800000> : vector<1x4xf32>
    %22 = vector.multi_reduction <maximumf>, %21, %cst_12 [1, 2] : vector<1x4x4x4xf32> to vector<1x4xf32>
    %23 = vector.extract_strided_slice %0 {offsets = [0, 8, 12, 0], sizes = [1, 4, 4, 4], strides = [1, 1, 1, 1]} : vector<1x16x16x4xf32> to vector<1x4x4x4xf32>
    %cst_13 = arith.constant dense<0xFF800000> : vector<1x4xf32>
    %24 = vector.multi_reduction <maximumf>, %23, %cst_13 [1, 2] : vector<1x4x4x4xf32> to vector<1x4xf32>
    %25 = vector.extract_strided_slice %0 {offsets = [0, 12, 0, 0], sizes = [1, 4, 4, 4], strides = [1, 1, 1, 1]} : vector<1x16x16x4xf32> to vector<1x4x4x4xf32>
    %cst_14 = arith.constant dense<0xFF800000> : vector<1x4xf32>
    %26 = vector.multi_reduction <maximumf>, %25, %cst_14 [1, 2] : vector<1x4x4x4xf32> to vector<1x4xf32>
    %27 = vector.extract_strided_slice %0 {offsets = [0, 12, 4, 0], sizes = [1, 4, 4, 4], strides = [1, 1, 1, 1]} : vector<1x16x16x4xf32> to vector<1x4x4x4xf32>
    %cst_15 = arith.constant dense<0xFF800000> : vector<1x4xf32>
    %28 = vector.multi_reduction <maximumf>, %27, %cst_15 [1, 2] : vector<1x4x4x4xf32> to vector<1x4xf32>
    %29 = vector.extract_strided_slice %0 {offsets = [0, 12, 8, 0], sizes = [1, 4, 4, 4], strides = [1, 1, 1, 1]} : vector<1x16x16x4xf32> to vector<1x4x4x4xf32>
    %cst_16 = arith.constant dense<0xFF800000> : vector<1x4xf32>
    %30 = vector.multi_reduction <maximumf>, %29, %cst_16 [1, 2] : vector<1x4x4x4xf32> to vector<1x4xf32>
    %31 = vector.extract_strided_slice %0 {offsets = [0, 12, 12, 0], sizes = [1, 4, 4, 4], strides = [1, 1, 1, 1]} : vector<1x16x16x4xf32> to vector<1x4x4x4xf32>
    %cst_17 = arith.constant dense<0xFF800000> : vector<1x4xf32>
    %32 = vector.multi_reduction <maximumf>, %31, %cst_17 [1, 2] : vector<1x4x4x4xf32> to vector<1x4xf32>
    %33 = arith.maximumf %2, %4 : vector<1x4xf32>
    %34 = arith.maximumf %33, %10 : vector<1x4xf32>
    %35 = arith.maximumf %34, %12 : vector<1x4xf32>
    %36 = arith.maximumf %6, %8 : vector<1x4xf32>
    %37 = arith.maximumf %36, %14 : vector<1x4xf32>
    %38 = arith.maximumf %37, %16 : vector<1x4xf32>
    %39 = arith.maximumf %18, %20 : vector<1x4xf32>
    %40 = arith.maximumf %39, %26 : vector<1x4xf32>
    %41 = arith.maximumf %40, %28 : vector<1x4xf32>
    %42 = arith.maximumf %22, %24 : vector<1x4xf32>
    %43 = arith.maximumf %42, %30 : vector<1x4xf32>
    %44 = arith.maximumf %43, %32 : vector<1x4xf32>
    %45 = arith.maximumf %35, %38 : vector<1x4xf32>
    %46 = arith.maximumf %45, %41 : vector<1x4xf32>
    %47 = arith.maximumf %46, %44 : vector<1x4xf32>
    %48 = tpu.concatenate %47, %35, %38, %41, %44, %2, %4, %6, %8, %10, %12, %14, %16, %18, %20, %22 in 1 : vector<1x4xf32>, vector<1x4xf32>, vector<1x4xf32>, vector<1x4xf32>, vector<1x4xf32>, vector<1x4xf32>, vector<1x4xf32>, vector<1x4xf32>, vector<1x4xf32>, vector<1x4xf32>, vector<1x4xf32>, vector<1x4xf32>, vector<1x4xf32>, vector<1x4xf32>, vector<1x4xf32>, vector<1x4xf32> -> vector<1x64xf32>
    %49 = tpu.concatenate %24, %26, %28, %30, %32 in 1 : vector<1x4xf32>, vector<1x4xf32>, vector<1x4xf32>, vector<1x4xf32>, vector<1x4xf32> -> vector<1x20xf32>
    %50 = tpu.concatenate %48, %49 in 1 : vector<1x64xf32>, vector<1x20xf32> -> vector<1x84xf32>
    %c0_18 = arith.constant 0 : index
    %c0_19 = arith.constant 0 : index
    %51 = vector.load %arg2[%c0_18, %c0_19] : memref<84x32xf32, #tpu.memory_space<vmem>>, vector<84x32xf32>
    %cst_20 = arith.constant dense<0.000000e+00> : vector<1x32xf32>
    %52 = tpu.matmul %50, %51, %cst_20 {dimension_numbers = #tpu.dot_dimension_numbers<[1], [0], [0], [1], [0, 0, 1, 1], [], []>} : vector<1x84xf32>, vector<84x32xf32>, vector<1x32xf32> -> vector<1x32xf32>
    %c0_21 = arith.constant 0 : index
    %c0_22 = arith.constant 0 : index
    %53 = vector.load %arg3[%c0_21, %c0_22] : memref<1x32xf32, #tpu.memory_space<vmem>>, vector<1x32xf32>
    %54 = arith.addf %52, %53 : vector<1x32xf32>
    %cst_23 = arith.constant 0.000000e+00 : f32
    %55 = vector.broadcast %cst_23 : f32 to vector<1x32xf32>
    %56 = arith.maximumf %54, %55 : vector<1x32xf32>
    %c0_24 = arith.constant 0 : index
    %c0_25 = arith.constant 0 : index
    %57 = vector.load %arg4[%c0_24, %c0_25] : memref<32x1xf32, #tpu.memory_space<vmem>>, vector<32x1xf32>
    %cst_26 = arith.constant dense<0.000000e+00> : vector<1x1xf32>
    %58 = tpu.matmul %56, %57, %cst_26 {dimension_numbers = #tpu.dot_dimension_numbers<[1], [0], [0], [1], [0, 0, 1, 1], [], []>} : vector<1x32xf32>, vector<32x1xf32>, vector<1x1xf32> -> vector<1x1xf32>
    %c0_27 = arith.constant 0 : index
    %c0_28 = arith.constant 0 : index
    %59 = vector.load %arg5[%c0_27, %c0_28] : memref<1x1xf32, #tpu.memory_space<vmem>>, vector<1x1xf32>
    %60 = arith.addf %58, %59 : vector<1x1xf32>
    %c0_29 = arith.constant 0 : index
    %c0_30 = arith.constant 0 : index
    %c0_31 = arith.constant 0 : index
    %61 = vector.load %arg6[%c0_29, %c0_30, %c0_31] : memref<1x1x1xf32, #tpu.memory_space<vmem>>, vector<1x1x1xf32>
    %62 = vector.shape_cast %61 : vector<1x1x1xf32> to vector<1x1xf32>
    %63 = vector.shape_cast %60 : vector<1x1xf32> to vector<1x1x1xf32>
    tpu.vector_store %arg6[%c0_29, %c0_30, %c0_31], %63 {strides = array<i32>} : memref<1x1x1xf32, #tpu.memory_space<vmem>>, vector<1x1x1xf32>,
    return
  }
  func.func @transform_0(%arg0: i32) -> (i32, i32, i32, i32) {
    %c0_i32 = arith.constant 0 : i32
    %c0_i32_0 = arith.constant 0 : i32
    %c0_i32_1 = arith.constant 0 : i32
    %c0_i32_2 = arith.constant 0 : i32
    return %arg0, %c0_i32, %c0_i32_0, %c0_i32_1 : i32, i32, i32, i32
  }
  func.func @transform_1(%arg0: i32) -> (i32, i32) {
    %c0_i32 = arith.constant 0 : i32
    %c0_i32_0 = arith.constant 0 : i32
    %c0_i32_1 = arith.constant 0 : i32
    return %c0_i32, %c0_i32_0 : i32, i32
  }
  func.func @transform_2(%arg0: i32) -> (i32, i32) {
    %c0_i32 = arith.constant 0 : i32
    %c0_i32_0 = arith.constant 0 : i32
    %c0_i32_1 = arith.constant 0 : i32
    return %c0_i32, %c0_i32_0 : i32, i32
  }
  func.func @transform_3(%arg0: i32) -> (i32, i32) {
    %c0_i32 = arith.constant 0 : i32
    %c0_i32_0 = arith.constant 0 : i32
    %c0_i32_1 = arith.constant 0 : i32
    return %c0_i32, %c0_i32_0 : i32, i32
  }
  func.func @transform_4(%arg0: i32) -> (i32, i32) {
    %c0_i32 = arith.constant 0 : i32
    %c0_i32_0 = arith.constant 0 : i32
    %c0_i32_1 = arith.constant 0 : i32
    return %c0_i32, %c0_i32_0 : i32, i32
  }
  func.func @transform_5(%arg0: i32) -> (i32, i32, i32) {
    %c0_i32 = arith.constant 0 : i32
    %c0_i32_0 = arith.constant 0 : i32
    %c0_i32_1 = arith.constant 0 : i32
    return %arg0, %c0_i32, %c0_i32_0 : i32, i32, i32
  }
}

</mosaic_0001>

<llo_original>
// kernel: tpu_custom_call.1
$region0: #{tpu_custom_call.1}
  #allocation0 [shape = 'u32[]', space=smem, size = 0x4, offset = 0x4, fixed_abs, tag = 'smem constant byte address 0x4 - core index']
  #allocation1 [shape = 'u32[144,128]{1,0:T(1,128)}', space=vmem, size = 0x12000, scoped, tag = 'internal scratch']
  #allocation2 [shape = 'f32[1,1]{1,0:T(1,128)S(1)}', space=vmem, size = 0x200, scoped, tag = 'scoped memory for tpu_custom_call.1']
  %s0 = inlined_call_operand.vmem [shape: f32[2,16,16,4], index: 0, kind: input, shape index: {}]
  %s1 = inlined_call_operand.vmem [shape: f32[84,32], index: 1, kind: input, shape index: {}]
  %s2 = inlined_call_operand.vmem [shape: f32[1,32], index: 2, kind: input, shape index: {}]
  %s3 = inlined_call_operand.vmem [shape: f32[32,1], index: 3, kind: input, shape index: {}]
  %s4 = inlined_call_operand.<no memory space> [shape: f32[1,1], index: 4, kind: input, shape index: {}]
  %s5 = inlined_call_operand.vmem [shape: f32[2,1,1], index: 5, kind: output, shape index: {}]
  %s6 = sld [smem:[#allocation0]]
  $region53: #{tpu_custom_call.1} parent=0
    _
  %s8 = ssub.s32 1, %s6
  %s9 = scalar_select 0, %s8, %s6
  %v10 = vstv %s4
  %11 = vst [vmem:[#allocation2] sm:$0x1] %v10
  loop: start=0, step=1, limit=4
  $region2: #{tpu_custom_call.1} parent=0 // loop_pre_header
    _
  $region3: #{tpu_custom_call.1} parent=0 // loop_header
    %s13 = sphi 0, %s17
    %p14 = scmp.ge.s32.totalorder %s13, 4
    %s23 = sphi 0, %s25
    %s26 = sphi 0, %s23
    %s27 = sphi 0, %s26
    %s43 = sphi 0, %s27
    %s47 = sphi 0, %s47
    %s49 = sphi 0, %s47
    %s50 = sphi 0, %s49
    %s64 = sphi 0, %s50
    %s68 = sphi 0, %s68
    %s70 = sphi 0, %s68
    %s71 = sphi 0, %s70
    %s85 = sphi 0, %s71
    %s89 = sphi 0, %s89
    %s91 = sphi 0, %s89
    %s92 = sphi 0, %s91
    %s106 = sphi 0, %s92
    %s110 = sphi 0, %s110
    %s112 = sphi 0, %s110
    %s113 = sphi 0, %s112
    %s127 = sphi 0, %s113
    %s133 = sphi 0, %s135
    %s136 = sphi 0, %s133
    %s137 = sphi 0, %s136
    %s153 = sphi 0, %s137
  $region4: #{tpu_custom_call.1} parent=0 // loop_header_branch
    %16 = sbr.rel (%p14) target = $region8
  $region5: #{tpu_custom_call.1} parent=0 // loop_body
    %s18 = ssub.s32 %s13, 1
    %s19 = ssub.s32 %s13, 2
    %s20 = sadd.s32 %s13, 1
    %s21 = ssub.s32 %s13, %s20
    %p22 = scmp.eq.s32.totalorder %s21, 0
    %s24 = sadd.s32 %s23, 1
    %s25 = scalar_select %p22, %s23, %s24
    %p28 = pneg %p22
    %p29 = scmp.eq.s32.totalorder %s13, 1
    %p30 = por %p28, %p29
    %p31 = scmp.ne.s32.totalorder %s23, %s26
    %p32 = scmp.eq.s32.totalorder %s13, 0
    %p33 = por %p31, %p32
    %p34 = scmp.ne.s32.totalorder %s23, %s26
    %p35 = scmp.eq.s32.totalorder %s18, 1
    %p36 = por %p34, %p35
    %p37 = scmp.ne.s32.totalorder %s26, %s27
    %p38 = scmp.eq.s32.totalorder %s18, 0
    %p39 = por %p37, %p38
    %p40 = scmp.ne.s32.totalorder %s26, %s27
    %p41 = scmp.eq.s32.totalorder %s19, 1
    %p42 = por %p40, %p41
    %p44 = scmp.ne.s32.totalorder %s27, %s43
    %p45 = scmp.eq.s32.totalorder %s19, 0
    %p46 = por %p44, %p45
    %s48 = sadd.s32 %s47, 1
    %p51 = scmp.eq.s32.totalorder %s13, 1
    %p52 = scmp.ne.s32.totalorder %s47, %s49
    %p53 = scmp.eq.s32.totalorder %s13, 0
    %p54 = por %p52, %p53
    %p55 = scmp.ne.s32.totalorder %s47, %s49
    %p56 = scmp.eq.s32.totalorder %s18, 1
    %p57 = por %p55, %p56
    %p58 = scmp.ne.s32.totalorder %s49, %s50
    %p59 = scmp.eq.s32.totalorder %s18, 0
    %p60 = por %p58, %p59
    %p61 = scmp.ne.s32.totalorder %s49, %s50
    %p62 = scmp.eq.s32.totalorder %s19, 1
    %p63 = por %p61, %p62
    %p65 = scmp.ne.s32.totalorder %s50, %s64
    %p66 = scmp.eq.s32.totalorder %s19, 0
    %p67 = por %p65, %p66
    %s69 = sadd.s32 %s68, 1
    %p72 = scmp.eq.s32.totalorder %s13, 1
    %p73 = scmp.ne.s32.totalorder %s68, %s70
    %p74 = scmp.eq.s32.totalorder %s13, 0
    %p75 = por %p73, %p74
    %p76 = scmp.ne.s32.totalorder %s68, %s70
    %p77 = scmp.eq.s32.totalorder %s18, 1
    %p78 = por %p76, %p77
    %p79 = scmp.ne.s32.totalorder %s70, %s71
    %p80 = scmp.eq.s32.totalorder %s18, 0
    %p81 = por %p79, %p80
    %p82 = scmp.ne.s32.totalorder %s70, %s71
    %p83 = scmp.eq.s32.totalorder %s19, 1
    %p84 = por %p82, %p83
    %p86 = scmp.ne.s32.totalorder %s71, %s85
    %p87 = scmp.eq.s32.totalorder %s19, 0
    %p88 = por %p86, %p87
    %s90 = sadd.s32 %s89, 1
    %p93 = scmp.eq.s32.totalorder %s13, 1
    %p94 = scmp.ne.s32.totalorder %s89, %s91
    %p95 = scmp.eq.s32.totalorder %s13, 0
    %p96 = por %p94, %p95
    %p97 = scmp.ne.s32.totalorder %s89, %s91
    %p98 = scmp.eq.s32.totalorder %s18, 1
    %p99 = por %p97, %p98
    %p100 = scmp.ne.s32.totalorder %s91, %s92
    %p101 = scmp.eq.s32.totalorder %s18, 0
    %p102 = por %p100, %p101
    %p103 = scmp.ne.s32.totalorder %s91, %s92
    %p104 = scmp.eq.s32.totalorder %s19, 1
    %p105 = por %p103, %p104
    %p107 = scmp.ne.s32.totalorder %s92, %s106
    %p108 = scmp.eq.s32.totalorder %s19, 0
    %p109 = por %p107, %p108
    %s111 = sadd.s32 %s110, 1
    %p114 = scmp.eq.s32.totalorder %s13, 1
    %p115 = scmp.ne.s32.totalorder %s110, %s112
    %p116 = scmp.eq.s32.totalorder %s13, 0
    %p117 = por %p115, %p116
    %p118 = scmp.ne.s32.totalorder %s110, %s112
    %p119 = scmp.eq.s32.totalorder %s18, 1
    %p120 = por %p118, %p119
    %p121 = scmp.ne.s32.totalorder %s112, %s113
    %p122 = scmp.eq.s32.totalorder %s18, 0
    %p123 = por %p121, %p122
    %p124 = scmp.ne.s32.totalorder %s112, %s113
    %p125 = scmp.eq.s32.totalorder %s19, 1
    %p126 = por %p124, %p125
    %p128 = scmp.ne.s32.totalorder %s113, %s127
    %p129 = scmp.eq.s32.totalorder %s19, 0
    %p130 = por %p128, %p129
    %s131 = ssub.s32 %s13, %s20
    %p132 = scmp.eq.s32.totalorder %s131, 0
    %s134 = sadd.s32 %s133, 1
    %s135 = scalar_select %p132, %s133, %s134
    %p138 = pneg %p132
    %p139 = scmp.eq.s32.totalorder %s13, 1
    %p140 = por %p138, %p139
    %p141 = scmp.ne.s32.totalorder %s133, %s136
    %p142 = scmp.eq.s32.totalorder %s13, 0
    %p143 = por %p141, %p142
    %p144 = scmp.ne.s32.totalorder %s133, %s136
    %p145 = scmp.eq.s32.totalorder %s18, 1
    %p146 = por %p144, %p145
    %p147 = scmp.ne.s32.totalorder %s136, %s137
    %p148 = scmp.eq.s32.totalorder %s18, 0
    %p149 = por %p147, %p148
    %p150 = scmp.ne.s32.totalorder %s136, %s137
    %p151 = scmp.eq.s32.totalorder %s19, 1
    %p152 = por %p150, %p151
    %p154 = scmp.ne.s32.totalorder %s137, %s153
    %p155 = scmp.eq.s32.totalorder %s19, 0
    %p156 = por %p154, %p155
    %p157 = scmp.le.s32.totalorder 1, %s13
    %p158 = scmp.lt.s32.totalorder %s13, 3
    %p159 = pnand %p157, %p158
    %p160 = pneg %p159
    // Predicated region
    $region9: #{tpu_custom_call.1} parent=5 // pred_check
      _
    $region10: #{tpu_custom_call.1} parent=5 // pred_check_branch
      %162 = sbr.rel (%p159) target = $region12
    $region11: #{tpu_custom_call.1} parent=5 // pred_region
      %s163 = ssub.s32 %s13, 1
      // Predicated region
      $region13: #{tpu_custom_call.1} parent=11 // pred_check
        %p164 = pneg %p60
      $region14: #{tpu_custom_call.1} parent=11 // pred_check_branch
        %166 = sbr.rel (%p164) target = $region16
      $region15: #{tpu_custom_call.1} parent=11 // pred_region
        _
      $region16: #{tpu_custom_call.1} parent=11 // pred_fallthru
        _
      // Predicated region
      $region17: #{tpu_custom_call.1} parent=11 // pred_check
        %p167 = pneg %p81
      $region18: #{tpu_custom_call.1} parent=11 // pred_check_branch
        %169 = sbr.rel (%p167) target = $region20
      $region19: #{tpu_custom_call.1} parent=11 // pred_region
        _
      $region20: #{tpu_custom_call.1} parent=11 // pred_fallthru
        _
      // Predicated region
      $region21: #{tpu_custom_call.1} parent=11 // pred_check
        %p170 = pneg %p102
      $region22: #{tpu_custom_call.1} parent=11 // pred_check_branch
        %172 = sbr.rel (%p170) target = $region24
      $region23: #{tpu_custom_call.1} parent=11 // pred_region
        _
      $region24: #{tpu_custom_call.1} parent=11 // pred_fallthru
        _
      // Predicated region
      $region25: #{tpu_custom_call.1} parent=11 // pred_check
        %p173 = pneg %p123
      $region26: #{tpu_custom_call.1} parent=11 // pred_check_branch
        %175 = sbr.rel (%p173) target = $region28
      $region27: #{tpu_custom_call.1} parent=11 // pred_region
        _
      $region28: #{tpu_custom_call.1} parent=11 // pred_fallthru
        _
    $region12: #{tpu_custom_call.1} parent=5 // pred_fallthru
      _
    %p176 = scmp.lt.s32.totalorder %s13, 2
    // Predicated region
    $region29: #{tpu_custom_call.1} parent=5 // pred_check
      %p177 = pneg %p176
    $region30: #{tpu_custom_call.1} parent=5 // pred_check_branch
      %179 = sbr.rel (%p177) target = $region32
    $region31: #{tpu_custom_call.1} parent=5 // pred_region
      // Predicated region
      $region33: #{tpu_custom_call.1} parent=31 // pred_check
        %p180 = pneg %p33
      $region34: #{tpu_custom_call.1} parent=31 // pred_check_branch
        %182 = sbr.rel (%p180) target = $region36
      $region35: #{tpu_custom_call.1} parent=31 // pred_region
        %p183 = scmp.lt.s32.totalorder %s13, 1
        %s184 = scalar_select %p183, %s13, 1
        %s185 = smul.addr %s184, 32
        %s186 = smul.addr %s185, 8
        %s187 = scalar_lea.vmem %s0, %s186
      $region36: #{tpu_custom_call.1} parent=31 // pred_fallthru
        _
    $region32: #{tpu_custom_call.1} parent=5 // pred_fallthru
      _
    %p188 = scmp.le.s32.totalorder 1, %s13
    %p189 = scmp.lt.s32.totalorder %s13, 3
    %p190 = pnand %p188, %p189
    %p191 = pneg %p190
    // Predicated region
    $region37: #{tpu_custom_call.1} parent=5 // pred_check
      _
    $region38: #{tpu_custom_call.1} parent=5 // pred_check_branch
      %193 = sbr.rel (%p190) target = $region40
    $region39: #{tpu_custom_call.1} parent=5 // pred_region
      %s194 = ssub.s32 %s13, 1
      %p195 = scmp.lt.s32.totalorder %s18, 1
      %s196 = scalar_select %p195, %s18, 1
      %s197 = smul.addr %s196, 32
      %s198 = smul.addr %s197, 8
      %s199 = scalar_lea.vmem %s0, %s198
      %p200 = pneg %p39
      %p201 = pneg %p36
      %p202 = pneg %p60
      %p203 = pneg %p57
      %p204 = pneg %p81
      %p205 = pneg %p78
      %p206 = pneg %p102
      %p207 = pneg %p99
      %p208 = pneg %p123
      %p209 = pneg %p120
      %p210 = pneg %p149
      %p211 = pneg %p146
      %p212 = scmp.lt.s32.totalorder %s18, 1
      %s213 = scalar_select %p212, %s18, 1
      %s214 = scalar_lea.vmem %s5, %s213
      %p215 = scmp.lt.s32.totalorder %s18, 1
      %s216 = scalar_select %p215, %s18, 1
      %s217 = smul.addr %s216, 32
      %s218 = smul.addr %s217, 8
      %s219 = scalar_lea.vmem %s0, %s218
      %p220 = scmp.lt.s32.totalorder %s18, 1
      %s221 = scalar_select %p220, %s18, 1
      %s222 = scalar_lea.vmem %s5, %s221
      %v223 = vld [vmem:[%s219] sm:$0xff]
      %v224 = vld [vmem:[%s219 + $0x8] sm:$0xff]
      %v225 = vld [vmem:[%s219 + $0x10] sm:$0xff]
      %v226 = vld [vmem:[%s219 + $0x18] sm:$0xff]
      %v227 = vld [vmem:[%s219 + $0x20] sm:$0xff]
      %v228 = vld [vmem:[%s219 + $0x28] sm:$0xff]
      %v229 = vld [vmem:[%s219 + $0x30] sm:$0xff]
      %v230 = vld [vmem:[%s219 + $0x38] sm:$0xff]
      %v231 = vld [vmem:[%s219 + $0x40] sm:$0xff]
      %v232 = vld [vmem:[%s219 + $0x48] sm:$0xff]
      %v233 = vld [vmem:[%s219 + $0x50] sm:$0xff]
      %v234 = vld [vmem:[%s219 + $0x58] sm:$0xff]
      %v235 = vld [vmem:[%s219 + $0x60] sm:$0xff]
      %v236 = vld [vmem:[%s219 + $0x68] sm:$0xff]
      %v237 = vld [vmem:[%s219 + $0x70] sm:$0xff]
      %v238 = vld [vmem:[%s219 + $0x78] sm:$0xff]
      %v239 = vld [vmem:[%s219 + $0x80] sm:$0xff]
      %v240 = vld [vmem:[%s219 + $0x88] sm:$0xff]
      %v241 = vld [vmem:[%s219 + $0x90] sm:$0xff]
      %v242 = vld [vmem:[%s219 + $0x98] sm:$0xff]
      %v243 = vld [vmem:[%s219 + $0xa0] sm:$0xff]
      %v244 = vld [vmem:[%s219 + $0xa8] sm:$0xff]
      %v245 = vld [vmem:[%s219 + $0xb0] sm:$0xff]
      %v246 = vld [vmem:[%s219 + $0xb8] sm:$0xff]
      %v247 = vld [vmem:[%s219 + $0xc0] sm:$0xff]
      %v248 = vld [vmem:[%s219 + $0xc8] sm:$0xff]
      %v249 = vld [vmem:[%s219 + $0xd0] sm:$0xff]
      %v250 = vld [vmem:[%s219 + $0xd8] sm:$0xff]
      %v251 = vld [vmem:[%s219 + $0xe0] sm:$0xff]
      %v252 = vld [vmem:[%s219 + $0xe8] sm:$0xff]
      %v253 = vld [vmem:[%s219 + $0xf0] sm:$0xff]
      %v254 = vld [vmem:[%s219 + $0xf8] sm:$0xff]
      %vm255 = vcmask 27648
      %v256 = vsel %vm255, %v223, -inf
      %v257 = vsel %vm255, %v225, -inf
      %v258 = vsel %vm255, %v227, -inf
      %v259 = vsel %vm255, %v229, -inf
      %v260 = vmax.f32 %v256, %v257
      %v261 = vmax.f32 %v258, %v259
      %v262 = vmax.f32 %v260, %v261
      %v263 = vrot.slane %v262, 4
      %v264 = vmax.f32 %v262, %v263
      %v265 = vrot.slane %v264, 2
      %v266 = vmax.f32 %v264, %v265
      %v267 = vrot.slane %v266, 1
      %v268 = vmax.f32 %v266, %v267
      %vm269 = vcmask 31748
      %v270 = vsel %vm269, %v223, -inf
      %v271 = vsel %vm269, %v225, -inf
      %v272 = vsel %vm269, %v227, -inf
      %v273 = vsel %vm269, %v229, -inf
      %v274 = vmax.f32 %v270, %v271
      %v275 = vmax.f32 %v272, %v273
      %v276 = vmax.f32 %v274, %v275
      %v277 = vrot.slane %v276, 4
      %v278 = vmax.f32 %v276, %v277
      %v279 = vrot.slane %v278, 2
      %v280 = vmax.f32 %v278, %v279
      %v281 = vrot.slane %v280, 1
      %v282 = vmax.f32 %v280, %v281
      %v283 = vsel %vm255, %v224, -inf
      %v284 = vsel %vm255, %v226, -inf
      %v285 = vsel %vm255, %v228, -inf
      %v286 = vsel %vm255, %v230, -inf
      %v287 = vmax.f32 %v283, %v284
      %v288 = vmax.f32 %v285, %v286
      %v289 = vmax.f32 %v287, %v288
      %v290 = vrot.slane %v289, 4
      %v291 = vmax.f32 %v289, %v290
      %v292 = vrot.slane %v291, 2
      %v293 = vmax.f32 %v291, %v292
      %v294 = vrot.slane %v293, 1
      %v295 = vmax.f32 %v293, %v294
      %v296 = vsel %vm269, %v224, -inf
      %v297 = vsel %vm269, %v226, -inf
      %v298 = vsel %vm269, %v228, -inf
      %v299 = vsel %vm269, %v230, -inf
      %v300 = vmax.f32 %v296, %v297
      %v301 = vmax.f32 %v298, %v299
      %v302 = vmax.f32 %v300, %v301
      %v303 = vrot.slane %v302, 4
      %v304 = vmax.f32 %v302, %v303
      %v305 = vrot.slane %v304, 2
      %v306 = vmax.f32 %v304, %v305
      %v307 = vrot.slane %v306, 1
      %v308 = vmax.f32 %v306, %v307
      %v309 = vsel %vm255, %v231, -inf
      %v310 = vsel %vm255, %v233, -inf
      %v311 = vsel %vm255, %v235, -inf
      %v312 = vsel %vm255, %v237, -inf
      %v313 = vmax.f32 %v309, %v310
      %v314 = vmax.f32 %v311, %v312
      %v315 = vmax.f32 %v313, %v314
      %v316 = vrot.slane %v315, 4
      %v317 = vmax.f32 %v315, %v316
      %v318 = vrot.slane %v317, 2
      %v319 = vmax.f32 %v317, %v318
      %v320 = vrot.slane %v319, 1
      %v321 = vmax.f32 %v319, %v320
      %v322 = vsel %vm269, %v231, -inf
      %v323 = vsel %vm269, %v233, -inf
      %v324 = vsel %vm269, %v235, -inf
      %v325 = vsel %vm269, %v237, -inf
      %v326 = vmax.f32 %v322, %v323
      %v327 = vmax.f32 %v324, %v325
      %v328 = vmax.f32 %v326, %v327
      %v329 = vrot.slane %v328, 4
      %v330 = vmax.f32 %v328, %v329
      %v331 = vrot.slane %v330, 2
      %v332 = vmax.f32 %v330, %v331
      %v333 = vrot.slane %v332, 1
      %v334 = vmax.f32 %v332, %v333
      %v335 = vsel %vm255, %v232, -inf
      %v336 = vsel %vm255, %v234, -inf
      %v337 = vsel %vm255, %v236, -inf
      %v338 = vsel %vm255, %v238, -inf
      %v339 = vmax.f32 %v335, %v336
      %v340 = vmax.f32 %v337, %v338
      %v341 = vmax.f32 %v339, %v340
      %v342 = vrot.slane %v341, 4
      %v343 = vmax.f32 %v341, %v342
      %v344 = vrot.slane %v343, 2
      %v345 = vmax.f32 %v343, %v344
      %v346 = vrot.slane %v345, 1
      %v347 = vmax.f32 %v345, %v346
      %v348 = vsel %vm269, %v232, -inf
      %v349 = vsel %vm269, %v234, -inf
      %v350 = vsel %vm269, %v236, -inf
      %v351 = vsel %vm269, %v238, -inf
      %v352 = vmax.f32 %v348, %v349
      %v353 = vmax.f32 %v350, %v351
      %v354 = vmax.f32 %v352, %v353
      %v355 = vrot.slane %v354, 4
      %v356 = vmax.f32 %v354, %v355
      %v357 = vrot.slane %v356, 2
      %v358 = vmax.f32 %v356, %v357
      %v359 = vrot.slane %v358, 1
      %v360 = vmax.f32 %v358, %v359
      %v361 = vsel %vm255, %v239, -inf
      %v362 = vsel %vm255, %v241, -inf
      %v363 = vsel %vm255, %v243, -inf
      %v364 = vsel %vm255, %v245, -inf
      %v365 = vmax.f32 %v361, %v362
      %v366 = vmax.f32 %v363, %v364
      %v367 = vmax.f32 %v365, %v366
      %v368 = vrot.slane %v367, 4
      %v369 = vmax.f32 %v367, %v368
      %v370 = vrot.slane %v369, 2
      %v371 = vmax.f32 %v369, %v370
      %v372 = vrot.slane %v371, 1
      %v373 = vmax.f32 %v371, %v372
      %v374 = vsel %vm269, %v239, -inf
      %v375 = vsel %vm269, %v241, -inf
      %v376 = vsel %vm269, %v243, -inf
      %v377 = vsel %vm269, %v245, -inf
      %v378 = vmax.f32 %v374, %v375
      %v379 = vmax.f32 %v376, %v377
      %v380 = vmax.f32 %v378, %v379
      %v381 = vrot.slane %v380, 4
      %v382 = vmax.f32 %v380, %v381
      %v383 = vrot.slane %v382, 2
      %v384 = vmax.f32 %v382, %v383
      %v385 = vrot.slane %v384, 1
      %v386 = vmax.f32 %v384, %v385
      %v387 = vsel %vm255, %v240, -inf
      %v388 = vsel %vm255, %v242, -inf
      %v389 = vsel %vm255, %v244, -inf
      %v390 = vsel %vm255, %v246, -inf
      %v391 = vmax.f32 %v387, %v388
      %v392 = vmax.f32 %v389, %v390
      %v393 = vmax.f32 %v391, %v392
      %v394 = vrot.slane %v393, 4
      %v395 = vmax.f32 %v393, %v394
      %v396 = vrot.slane %v395, 2
      %v397 = vmax.f32 %v395, %v396
      %v398 = vrot.slane %v397, 1
      %v399 = vmax.f32 %v397, %v398
      %v400 = vsel %vm269, %v240, -inf
      %v401 = vsel %vm269, %v242, -inf
      %v402 = vsel %vm269, %v244, -inf
      %v403 = vsel %vm269, %v246, -inf
      %v404 = vmax.f32 %v400, %v401
      %v405 = vmax.f32 %v402, %v403
      %v406 = vmax.f32 %v404, %v405
      %v407 = vrot.slane %v406, 4
      %v408 = vmax.f32 %v406, %v407
      %v409 = vrot.slane %v408, 2
      %v410 = vmax.f32 %v408, %v409
      %v411 = vrot.slane %v410, 1
      %v412 = vmax.f32 %v410, %v411
      %v413 = vsel %vm255, %v247, -inf
      %v414 = vsel %vm255, %v249, -inf
      %v415 = vsel %vm255, %v251, -inf
      %v416 = vsel %vm255, %v253, -inf
      %v417 = vmax.f32 %v413, %v414
      %v418 = vmax.f32 %v415, %v416
      %v419 = vmax.f32 %v417, %v418
      %v420 = vrot.slane %v419, 4
      %v421 = vmax.f32 %v419, %v420
      %v422 = vrot.slane %v421, 2
      %v423 = vmax.f32 %v421, %v422
      %v424 = vrot.slane %v423, 1
      %v425 = vmax.f32 %v423, %v424
      %v426 = vsel %vm269, %v247, -inf
      %v427 = vsel %vm269, %v249, -inf
      %v428 = vsel %vm269, %v251, -inf
      %v429 = vsel %vm269, %v253, -inf
      %v430 = vmax.f32 %v426, %v427
      %v431 = vmax.f32 %v428, %v429
      %v432 = vmax.f32 %v430, %v431
      %v433 = vrot.slane %v432, 4
      %v434 = vmax.f32 %v432, %v433
      %v435 = vrot.slane %v434, 2
      %v436 = vmax.f32 %v434, %v435
      %v437 = vrot.slane %v436, 1
      %v438 = vmax.f32 %v436, %v437
      %v439 = vsel %vm255, %v248, -inf
      %v440 = vsel %vm255, %v250, -inf
      %v441 = vsel %vm255, %v252, -inf
      %v442 = vsel %vm255, %v254, -inf
      %v443 = vmax.f32 %v439, %v440
      %v444 = vmax.f32 %v441, %v442
      %v445 = vmax.f32 %v443, %v444
      %v446 = vrot.slane %v445, 4
      %v447 = vmax.f32 %v445, %v446
      %v448 = vrot.slane %v447, 2
      %v449 = vmax.f32 %v447, %v448
      %v450 = vrot.slane %v449, 1
      %v451 = vmax.f32 %v449, %v450
      %v452 = vsel %vm269, %v248, -inf
      %v453 = vsel %vm269, %v250, -inf
      %v454 = vsel %vm269, %v252, -inf
      %v455 = vsel %vm269, %v254, -inf
      %v456 = vmax.f32 %v452, %v453
      %v457 = vmax.f32 %v454, %v455
      %v458 = vmax.f32 %v456, %v457
      %v459 = vrot.slane %v458, 4
      %v460 = vmax.f32 %v458, %v459
      %v461 = vrot.slane %v460, 2
      %v462 = vmax.f32 %v460, %v461
      %v463 = vrot.slane %v462, 1
      %v464 = vmax.f32 %v462, %v463
      %v465 = vmax.f32 %v268, %v282
      %v466 = vmax.f32 %v465, %v321
      %v467 = vmax.f32 %v466, %v334
      %v468 = vmax.f32 %v295, %v308
      %v469 = vmax.f32 %v468, %v347
      %v470 = vmax.f32 %v469, %v360
      %v471 = vmax.f32 %v373, %v386
      %v472 = vmax.f32 %v471, %v425
      %v473 = vmax.f32 %v472, %v438
      %v474 = vmax.f32 %v399, %v412
      %v475 = vmax.f32 %v474, %v451
      %v476 = vmax.f32 %v475, %v464
      %v477 = vmax.f32 %v467, %v470
      %v478 = vmax.f32 %v477, %v473
      %v479 = vmax.f32 %v478, %v476
      %481 = vrot.lane.b32.xlu0 %v467, 4
      %v482 = vpop.permute.xlu0 %481
      %485 = vrot.lane.b32.xlu0 %v470, 8
      %v486 = vpop.permute.xlu0 %485
      %489 = vrot.lane.b32.xlu0 %v473, 12
      %v490 = vpop.permute.xlu0 %489
      %493 = vrot.lane.b32.xlu0 %v476, 16
      %v494 = vpop.permute.xlu0 %493
      %497 = vrot.lane.b32.xlu0 %v268, 20
      %v498 = vpop.permute.xlu0 %497
      %501 = vrot.lane.b32.xlu0 %v282, 24
      %v502 = vpop.permute.xlu0 %501
      %505 = vrot.lane.b32.xlu0 %v295, 28
      %v506 = vpop.permute.xlu0 %505
      %509 = vrot.lane.b32.xlu0 %v308, 32
      %v510 = vpop.permute.xlu0 %509
      %513 = vrot.lane.b32.xlu0 %v321, 36
      %v514 = vpop.permute.xlu0 %513
      %517 = vrot.lane.b32.xlu0 %v334, 40
      %v518 = vpop.permute.xlu0 %517
      %521 = vrot.lane.b32.xlu0 %v347, 44
      %v522 = vpop.permute.xlu0 %521
      %525 = vrot.lane.b32.xlu0 %v360, 48
      %v526 = vpop.permute.xlu0 %525
      %529 = vrot.lane.b32.xlu0 %v373, 52
      %v530 = vpop.permute.xlu0 %529
      %533 = vrot.lane.b32.xlu0 %v386, 56
      %v534 = vpop.permute.xlu0 %533
      %537 = vrot.lane.b32.xlu0 %v399, 60
      %v538 = vpop.permute.xlu0 %537
      %vm540 = vcmask 31744
      %v541 = vsel %vm540, %v479, %v482
      %vm542 = vcmask 64512
      %v543 = vsel %vm542, %v541, %v486
      %vm544 = vcmask 97280
      %v545 = vsel %vm544, %v543, %v490
      %vm546 = vcmask 130048
      %v547 = vsel %vm546, %v545, %v494
      %vm548 = vcmask 162816
      %v549 = vsel %vm548, %v547, %v498
      %vm550 = vcmask 195584
      %v551 = vsel %vm550, %v549, %v502
      %vm552 = vcmask 228352
      %v553 = vsel %vm552, %v551, %v506
      %vm554 = vcmask 261120
      %v555 = vsel %vm554, %v553, %v510
      %vm556 = vcmask 293888
      %v557 = vsel %vm556, %v555, %v514
      %vm558 = vcmask 326656
      %v559 = vsel %vm558, %v557, %v518
      %vm560 = vcmask 359424
      %v561 = vsel %vm560, %v559, %v522
      %vm562 = vcmask 392192
      %v563 = vsel %vm562, %v561, %v526
      %vm564 = vcmask 424960
      %v565 = vsel %vm564, %v563, %v530
      %vm566 = vcmask 457728
      %v567 = vsel %vm566, %v565, %v534
      %vm568 = vcmask 490496
      %v569 = vsel %vm568, %v567, %v538
      %571 = vrot.lane.b32.xlu0 %v425, 4
      %v572 = vpop.permute.xlu0 %571
      %575 = vrot.lane.b32.xlu0 %v438, 8
      %v576 = vpop.permute.xlu0 %575
      %579 = vrot.lane.b32.xlu0 %v451, 12
      %v580 = vpop.permute.xlu0 %579
      %583 = vrot.lane.b32.xlu0 %v464, 16
      %v584 = vpop.permute.xlu0 %583
      %v586 = vsel %vm540, %v412, %v572
      %v587 = vsel %vm542, %v586, %v576
      %v588 = vsel %vm544, %v587, %v580
      %v589 = vsel %vm546, %v588, %v584
      %591 = vrot.lane.b32.xlu0 %v589, 64
      %v592 = vpop.permute.xlu0 %591
      %vm594 = vcmask 523264
      %v595 = vsel %vm594, %v569, %v592
      %v596 = vld [vmem:[%s1] sm:$0xff]
      %v597 = vld [vmem:[%s1 + $0x8] sm:$0xff]
      %v598 = vld [vmem:[%s1 + $0x10] sm:$0xff]
      %v599 = vld [vmem:[%s1 + $0x18] sm:$0xff]
      %v600 = vld [vmem:[%s1 + $0x20] sm:$0xff]
      %v601 = vld [vmem:[%s1 + $0x28] sm:$0xff]
      %v602 = vld [vmem:[%s1 + $0x30] sm:$0xff]
      %v603 = vld [vmem:[%s1 + $0x38] sm:$0xff]
      %v604 = vld [vmem:[%s1 + $0x40] sm:$0xff]
      %v605 = vld [vmem:[%s1 + $0x48] sm:$0xff]
      %v606 = vld [vmem:[%s1 + $0x50] sm:$0xf]
      %v607 = vld [vmem:[%s2] sm:$0x1]
      %vm608 = vcmask 687104
      %v610 = vsel %vm608, %v595, 0
      %vm612 = vcmask 1043456
      %v614 = vsel %vm612, %v606, 0
      %616 = vmatprep.subr.mxu0 0.0
      %617 = vmatpush1.msra.mxu0 0.0
      %618 = vmatprep.subr.mxu0 0.0
      %619 = vmatpush1.msra.mxu0 0.0
      %620 = vmatprep.subr.mxu0 0.0
      %621 = vmatpush1.msra.mxu0 0.0
      %622 = vmatprep.subr.mxu0 0.0
      %623 = vmatpush1.msra.mxu0 0.0
      %624 = vmatprep.subr.mxu0 0.0
      %625 = vmatpush1.msra.mxu0 0.0
      %626 = vmatprep.subr.mxu0 0.0
      %627 = vmatpush1.msra.mxu0 %v614
      %628 = vmatprep.subr.mxu0 0.0
      %629 = vmatpush1.msra.mxu0 %v605
      %630 = vmatprep.subr.mxu0 0.0
      %631 = vmatpush1.msra.mxu0 %v604
      %632 = vmatprep.subr.mxu0 0.0
      %633 = vmatpush1.msra.mxu0 %v603
      %634 = vmatprep.subr.mxu0 0.0
      %635 = vmatpush1.msra.mxu0 %v602
      %636 = vmatprep.subr.mxu0 0.0
      %637 = vmatpush1.msra.mxu0 %v601
      %638 = vmatprep.subr.mxu0 0.0
      %639 = vmatpush1.msra.mxu0 %v600
      %640 = vmatprep.subr.mxu0 0.0
      %641 = vmatpush1.msra.mxu0 %v599
      %642 = vmatprep.subr.mxu0 0.0
      %643 = vmatpush1.msra.mxu0 %v598
      %644 = vmatprep.subr.mxu0 0.0
      %645 = vmatpush1.msra.mxu0 %v597
      %646 = vmatprep.subr.mxu0 0.0
      %647 = vmatpush1.msra.mxu0 %v596
      %648 = vmatprep.subr.mxu0 0.0
      %649 = vmatpush2.msra.mxu0 0.0
      %650 = vmatprep.subr.mxu0 0.0
      %651 = vmatpush2.msra.mxu0 0.0
      %652 = vmatprep.subr.mxu0 0.0
      %653 = vmatpush2.msra.mxu0 0.0
      %654 = vmatprep.subr.mxu0 0.0
      %655 = vmatpush2.msra.mxu0 0.0
      %656 = vmatprep.subr.mxu0 0.0
      %657 = vmatpush2.msra.mxu0 0.0
      %658 = vmatprep.subr.mxu0 0.0
      %659 = vmatpush2.msra.mxu0 0.0
      %660 = vmatprep.subr.mxu0 0.0
      %661 = vmatpush2.msra.mxu0 0.0
      %662 = vmatprep.subr.mxu0 0.0
      %663 = vmatpush2.msra.mxu0 0.0
      %664 = vmatprep.subr.mxu0 0.0
      %665 = vmatpush2.msra.mxu0 0.0
      %666 = vmatprep.subr.mxu0 0.0
      %667 = vmatpush2.msra.mxu0 0.0
      %668 = vmatprep.subr.mxu0 0.0
      %669 = vmatpush2.msra.mxu0 0.0
      %670 = vmatprep.subr.mxu0 0.0
      %671 = vmatpush2.msra.mxu0 0.0
      %672 = vmatprep.subr.mxu0 0.0
      %673 = vmatpush2.msra.mxu0 0.0
      %674 = vmatprep.subr.mxu0 0.0
      %675 = vmatpush2.msra.mxu0 0.0
      %676 = vmatprep.subr.mxu0 0.0
      %677 = vmatpush2.msra.mxu0 0.0
      %678 = vmatprep.subr.mxu0 0.0
      %679 = vmatpush2.msra.mxu0 0.0
      %680 = vmatprep.mubr.f32.mxu0 0.0
      %681 = vmatmul.mubr.f32.gmra.mxu0 %v610
      %v682 = vpop.f32.mrf.mxu0
      %v683 = vadd.f32 %v607, %v682
      %v684 = vpop.f32.mrf.mxu0
      %685 = vdwg.mxu0
      %v686 = vmax.f32 %v683, 0.0
      %v687 = vld [vmem:[%s3] sm:$0xff]
      %v688 = vld [vmem:[%s3 + $0x8] sm:$0xff]
      %v689 = vld [vmem:[%s3 + $0x10] sm:$0xff]
      %v690 = vld [vmem:[%s3 + $0x18] sm:$0xff]
      %v691 = vld [vmem:[#allocation2] sm:$0x1]
      %v693 = vsel %vm554, %v686, 0
      %695 = vmatprep.subr.mxu0 0.0
      %696 = vmatpush1.msra.mxu0 0.0
      %697 = vmatprep.subr.mxu0 0.0
      %698 = vmatpush1.msra.mxu0 0.0
      %699 = vmatprep.subr.mxu0 0.0
      %700 = vmatpush1.msra.mxu0 0.0
      %701 = vmatprep.subr.mxu0 0.0
      %702 = vmatpush1.msra.mxu0 0.0
      %703 = vmatprep.subr.mxu0 0.0
      %704 = vmatpush1.msra.mxu0 0.0
      %705 = vmatprep.subr.mxu0 0.0
      %706 = vmatpush1.msra.mxu0 0.0
      %707 = vmatprep.subr.mxu0 0.0
      %708 = vmatpush1.msra.mxu0 0.0
      %709 = vmatprep.subr.mxu0 0.0
      %710 = vmatpush1.msra.mxu0 0.0
      %711 = vmatprep.subr.mxu0 0.0
      %712 = vmatpush1.msra.mxu0 0.0
      %713 = vmatprep.subr.mxu0 0.0
      %714 = vmatpush1.msra.mxu0 0.0
      %715 = vmatprep.subr.mxu0 0.0
      %716 = vmatpush1.msra.mxu0 0.0
      %717 = vmatprep.subr.mxu0 0.0
      %718 = vmatpush1.msra.mxu0 0.0
      %719 = vmatprep.subr.mxu0 0.0
      %720 = vmatpush1.msra.mxu0 %v690
      %721 = vmatprep.subr.mxu0 0.0
      %722 = vmatpush1.msra.mxu0 %v689
      %723 = vmatprep.subr.mxu0 0.0
      %724 = vmatpush1.msra.mxu0 %v688
      %725 = vmatprep.subr.mxu0 0.0
      %726 = vmatpush1.msra.mxu0 %v687
      %727 = vmatprep.subr.mxu0 0.0
      %728 = vmatpush2.msra.mxu0 0.0
      %729 = vmatprep.subr.mxu0 0.0
      %730 = vmatpush2.msra.mxu0 0.0
      %731 = vmatprep.subr.mxu0 0.0
      %732 = vmatpush2.msra.mxu0 0.0
      %733 = vmatprep.subr.mxu0 0.0
      %734 = vmatpush2.msra.mxu0 0.0
      %735 = vmatprep.subr.mxu0 0.0
      %736 = vmatpush2.msra.mxu0 0.0
      %737 = vmatprep.subr.mxu0 0.0
      %738 = vmatpush2.msra.mxu0 0.0
      %739 = vmatprep.subr.mxu0 0.0
      %740 = vmatpush2.msra.mxu0 0.0
      %741 = vmatprep.subr.mxu0 0.0
      %742 = vmatpush2.msra.mxu0 0.0
      %743 = vmatprep.subr.mxu0 0.0
      %744 = vmatpush2.msra.mxu0 0.0
      %745 = vmatprep.subr.mxu0 0.0
      %746 = vmatpush2.msra.mxu0 0.0
      %747 = vmatprep.subr.mxu0 0.0
      %748 = vmatpush2.msra.mxu0 0.0
      %749 = vmatprep.subr.mxu0 0.0
      %750 = vmatpush2.msra.mxu0 0.0
      %751 = vmatprep.subr.mxu0 0.0
      %752 = vmatpush2.msra.mxu0 0.0
      %753 = vmatprep.subr.mxu0 0.0
      %754 = vmatpush2.msra.mxu0 0.0
      %755 = vmatprep.subr.mxu0 0.0
      %756 = vmatpush2.msra.mxu0 0.0
      %757 = vmatprep.subr.mxu0 0.0
      %758 = vmatpush2.msra.mxu0 0.0
      %759 = vmatprep.mubr.f32.mxu0 0.0
      %760 = vmatmul.mubr.f32.gmra.mxu0 %v693
      %v761 = vpop.f32.mrf.mxu0
      %v762 = vadd.f32 %v691, %v761
      %v763 = vpop.f32.mrf.mxu0
      %764 = vdwg.mxu0
      %vm765 = vcmask 0
      %766 = vst.msk [vmem:[%s222] sm:$0x1] %vm765, %v762
      %p767 = scmp.lt.s32.totalorder %s18, 1
      %s768 = scalar_select %p767, %s18, 1
      %s769 = scalar_lea.vmem %s5, %s768
      // Predicated region
      $region41: #{tpu_custom_call.1} parent=39 // pred_check
        %p770 = pneg %p146
      $region42: #{tpu_custom_call.1} parent=39 // pred_check_branch
        %772 = sbr.rel (%p770) target = $region44
      $region43: #{tpu_custom_call.1} parent=39 // pred_region
        _
      $region44: #{tpu_custom_call.1} parent=39 // pred_fallthru
        _
    $region40: #{tpu_custom_call.1} parent=5 // pred_fallthru
      _
    %p773 = scmp.le.s32.totalorder 2, %s13
    // Predicated region
    $region45: #{tpu_custom_call.1} parent=5 // pred_check
      %p774 = pneg %p773
    $region46: #{tpu_custom_call.1} parent=5 // pred_check_branch
      %776 = sbr.rel (%p774) target = $region48
    $region47: #{tpu_custom_call.1} parent=5 // pred_region
      %s777 = ssub.s32 %s13, 2
      // Predicated region
      $region49: #{tpu_custom_call.1} parent=47 // pred_check
        %p778 = pneg %p152
      $region50: #{tpu_custom_call.1} parent=47 // pred_check_branch
        %780 = sbr.rel (%p778) target = $region52
      $region51: #{tpu_custom_call.1} parent=47 // pred_region
        %p781 = scmp.lt.s32.totalorder %s19, 1
        %s782 = scalar_select %p781, %s19, 1
        %s783 = scalar_lea.vmem %s5, %s782
      $region52: #{tpu_custom_call.1} parent=47 // pred_fallthru
        _
    $region48: #{tpu_custom_call.1} parent=5 // pred_fallthru
      _
  $region6: #{tpu_custom_call.1} parent=0 // loop_footer
    %s17 = sadd.s32 1, %s13
  $region7: #{tpu_custom_call.1} parent=0 // loop_footer_branch
    %12 = sbr.rel target = $region3
  $region8: #{tpu_custom_call.1} parent=0 // loop_exit
    _

</llo_original>
